<compile_context>
chip_gen: v7x
topology: tpu7x:2x2x1
jax: 0.10.0
libtpu: 0.0.40
codegen_flags: <defaults>
</compile_context>

<pallas_src>
import functools

import jax
import jax.numpy as jnp
from jax.experimental import pallas as pl
from jax.experimental.pallas import tpu as pltpu


def _round_up(n, m):
    return ((n + m - 1) // m) * m


def _cdiv(a, b):
    return (a + b - 1) // b


def _tpu_generation():
    """Returns (vmem_bytes_per_core, is_v5, multi_tc) with safe fallbacks."""
    kind = ""
    try:
        kind = jax.devices()[0].device_kind.lower()
    except Exception:
        pass
    vmem = None
    try:
        info = pltpu.get_tpu_info()
        for attr in ("vmem_capacity_bytes", "vmem_bytes", "vmem_size_bytes"):
            v = getattr(info, attr, None)
            if v:
                vmem = int(v)
                break
    except Exception:
        pass
    if vmem is None:
        vmem = (64 << 20) if ("7" in kind) else (128 << 20)
    is_v5 = "v5" in kind
    # v7x: 2 TensorCores per chip, 64 MiB VMEM per TC.
    multi_tc = vmem <= (64 << 20)
    return vmem, is_v5, multi_tc


def _gated_attn_kernel(x_ref, wab_ref, bab_ref, wc_ref, bc_ref, A_ref,
                       *, Dp, matmul_dtype, act_dtype, c_is_one):
    # x tile: (bn, L).  Cast to the MXU dtype in-register; x stays f32 in HBM
    # so no extra bandwidth is spent on a wrapper-side cast.
    x = x_ref[...].astype(matmul_dtype)

    # Fused attention_a / attention_b first stage: ONE MXU pass over x,
    # f32 accumulation, bias add in f32, then activation dtype (bf16 on
    # v6e/v7x, f32 on v5e / exact mode).
    h = (jnp.dot(x, wab_ref[...], preferred_element_type=jnp.float32)
         + bab_ref[...]).astype(act_dtype)                 # (bn, 2*Dp)

    a = jnp.tanh(h[:, :Dp])                                # (bn, Dp)  EUP
    b = jax.nn.sigmoid(h[:, Dp:])                          # (bn, Dp)  EUP
    g = a * b                                              # (bn, Dp)  VPU

    if c_is_one:
        # n_classes == 1: (Dp -> 1) projection as VPU multiply + lane reduce
        # (f32 accumulation) instead of a 1-output-lane MXU matmul.
        prod = (g * wc_ref[...].astype(act_dtype)).astype(jnp.float32)
        A = jnp.sum(prod, axis=-1, keepdims=True) + bc_ref[...]
    else:
        A = (jnp.dot(g.astype(matmul_dtype), wc_ref[...],
                     preferred_element_type=jnp.float32)
             + bc_ref[...])                                # (bn, C)
    A_ref[...] = A.astype(A_ref.dtype)


def attn_net_gated_forward(x, wa, ba, wb, bb, wc, bc, *,
                           block_n=None, matmul_dtype=jnp.bfloat16,
                           act_dtype=None):
    """Pallas implementation of Attn_Net_Gated.forward.

    Args:
      x:  (N, L) input features (the MIL bag).
      wa: (L, D) attention_a Linear weight, already transposed (in, out).
      ba: (D,)   attention_a Linear bias.
      wb: (L, D) attention_b Linear weight, transposed.
      bb: (D,)   attention_b Linear bias.
      wc: (D, C) attention_c Linear weight, transposed.
      bc: (C,)   attention_c Linear bias.
      block_n:      rows per grid step (None = auto, generation aware).
      matmul_dtype: MXU operand dtype (bf16 default with f32 accumulation;
                    use f32 for exact results -- documented quantization).
      act_dtype:    activation/gating dtype (None = auto: bf16 on v6e/v7x when
                    matmul_dtype is bf16, f32 on v5e or when matmul_dtype=f32).

    Returns:
      (A, x) with A of shape (N, C), matching the PyTorch module.
    """
    N, L = x.shape
    D = wa.shape[1]
    C = wc.shape[1]
    out_dtype = x.dtype

    vmem_total, is_v5, multi_tc = _tpu_generation()
    matmul_dtype = jnp.dtype(matmul_dtype)
    if act_dtype is None:
        act_dtype = (jnp.float32
                     if (is_v5 or matmul_dtype == jnp.dtype(jnp.float32))
                     else jnp.bfloat16)
    act_dtype = jnp.dtype(act_dtype)

    # ---- hidden dim padded to full 128-lane vregs (weights only; x untouched)
    # Padding is exact: tanh(0)=0 zeroes the gate in padded hidden columns and
    # the padded wc rows are zero.
    Dp = _round_up(D, 128)

    def padcols(w):
        return jnp.pad(w, ((0, 0), (0, Dp - w.shape[1])))

    wab = jnp.concatenate([padcols(wa), padcols(wb)], axis=1) \
             .astype(matmul_dtype)                                  # (L, 2*Dp)
    bab = jnp.concatenate([jnp.pad(ba, (0, Dp - D)),
                           jnp.pad(bb, (0, Dp - D))]) \
             .reshape(1, 2 * Dp).astype(jnp.float32)

    c_is_one = (C == 1)
    wc_p = jnp.pad(wc, ((0, Dp - D), (0, 0)))                       # (Dp, C)
    if c_is_one:
        # Row-vector form for the VPU path (reshape of a column vector is a
        # true transpose here).  Kept in f32; cast in-kernel if needed.
        wc_prep = wc_p.reshape(1, Dp).astype(jnp.float32)
        wc_block = (1, Dp)
    else:
        wc_prep = wc_p.astype(matmul_dtype)
        wc_block = (Dp, C)
    bc2 = bc.reshape(1, C).astype(jnp.float32)

    # ---- tile-size selection (generation aware) ----------------------------
    vmem_cap = max(int(vmem_total * 3 // 4), 32 << 20)  # ~96 MiB v5e/v6e, ~48 MiB v7x
    if block_n is None:
        block_n = 1024 if multi_tc else 2048
    # Feed both TensorCores on v7x (>= 4 grid steps); >= 2 steps elsewhere so
    # the x DMA pipeline has something to overlap.
    min_steps = 4 if multi_tc else 2
    block_n = min(int(block_n), _round_up(_cdiv(N, min_steps), 8))
    block_n = max(8, _round_up(block_n, 8))

    x_bytes = x.dtype.itemsize
    out_bytes = jnp.dtype(out_dtype).itemsize
    w_bytes = 2 * (wab.size * wab.dtype.itemsize + bab.size * 4
                   + wc_prep.size * wc_prep.dtype.itemsize + bc2.size * 4)

    def est(bn):
        return (2 * bn * L * x_bytes                 # double-buffered x tiles
                + 2 * bn * C * out_bytes             # double-buffered out tiles
                + w_bytes                            # (double-buffered) weights
                + bn * 2 * Dp * 4                    # h in f32
                + 3 * bn * Dp * act_dtype.itemsize)  # a, b, g

    while block_n > 8 and est(block_n) > vmem_cap:
        block_n = max(8, _round_up(block_n // 2, 8))
    vmem_limit = int(min(max(est(block_n) * 5 // 4 + (4 << 20), 32 << 20),
                         vmem_cap))

    grid = (_cdiv(N, block_n),)   # no row padding of x: partial last block OK

    kernel = functools.partial(_gated_attn_kernel, Dp=Dp,
                               matmul_dtype=matmul_dtype, act_dtype=act_dtype,
                               c_is_one=c_is_one)

    A = pl.pallas_call(
        kernel,
        out_shape=jax.ShapeDtypeStruct((N, C), out_dtype),
        grid_spec=pltpu.PrefetchScalarGridSpec(
            num_scalar_prefetch=0,
            grid=grid,
            in_specs=[
                pl.BlockSpec((block_n, L), lambda i: (i, 0)),   # x tile (no copy)
                pl.BlockSpec((L, 2 * Dp), lambda i: (0, 0)),    # fused Wa|Wb
                pl.BlockSpec((1, 2 * Dp), lambda i: (0, 0)),    # fused ba|bb
                pl.BlockSpec(wc_block, lambda i: (0, 0)),       # Wc (or row form)
                pl.BlockSpec((1, C), lambda i: (0, 0)),         # bc
            ],
            out_specs=pl.BlockSpec((block_n, C), lambda i: (i, 0)),
        ),
        compiler_params=pltpu.CompilerParams(
            dimension_semantics=("parallel",),   # v7x: shard rows over both TCs
            vmem_limit_bytes=vmem_limit),
    )(x, wab, bab, wc_prep, bc2)

    return A, x


def _reference(x, wa, ba, wb, bb, wc, bc):
    a = jnp.tanh(x @ wa + ba)
    b = jax.nn.sigmoid(x @ wb + bb)
    return (a * b) @ wc + bc


if __name__ == "__main__":
    # Small shapes consistent with the module (L in-features, D hidden,
    # n_classes=1); N chosen not a multiple of 8 to exercise partial blocks.
    N, L, D, C = 20, 32, 16, 1

    key = jax.random.PRNGKey(0)
    kx, kwa, kba, kwb, kbb, kwc, kbc = jax.random.split(key, 7)

    x = jax.random.normal(kx, (N, L), dtype=jnp.float32)
    wa = jax.random.normal(kwa, (L, D), dtype=jnp.float32) * 0.1
    ba = jax.random.normal(kba, (D,), dtype=jnp.float32) * 0.1
    wb = jax.random.normal(kwb, (L, D), dtype=jnp.float32) * 0.1
    bb = jax.random.normal(kbb, (D,), dtype=jnp.float32) * 0.1
    wc = jax.random.normal(kwc, (D, C), dtype=jnp.float32) * 0.1
    bc = jax.random.normal(kbc, (C,), dtype=jnp.float32) * 0.1

    A_ref = _reference(x, wa, ba, wb, bb, wc, bc)

    # 1) f32 matmul path: exact against the reference.
    A32, x_out = attn_net_gated_forward(x, wa, ba, wb, bb, wc, bc,
                                        matmul_dtype=jnp.float32)
    A32 = jax.block_until_ready(A32)
    x_out = jax.block_until_ready(x_out)
    assert A32.shape == (N, C) and x_out.shape == x.shape
    assert jnp.allclose(A32, A_ref, atol=1e-5, rtol=1e-5), "f32 mismatch"

    # 2) bf16 matmul path (default perf config; activations bf16 on v6e/v7x,
    #    f32 on v5e).
    A16, _ = attn_net_gated_forward(x, wa, ba, wb, bb, wc, bc,
                                    matmul_dtype=jnp.bfloat16)
    A16 = jax.block_until_ready(A16)
    assert jnp.allclose(A16, A_ref, atol=5e-2, rtol=5e-2), "bf16 mismatch"

    # 3) n_classes=3 head: exercises the MXU projection branch.
    C3 = 3
    wc3 = jax.random.normal(kwc, (D, C3), dtype=jnp.float32) * 0.1
    bc3 = jax.random.normal(kbc, (C3,), dtype=jnp.float32) * 0.1
    A3, _ = attn_net_gated_forward(x, wa, ba, wb, bb, wc3, bc3,
                                   matmul_dtype=jnp.float32)
    A3 = jax.block_until_ready(A3)
    assert jnp.allclose(A3, _reference(x, wa, ba, wb, bb, wc3, bc3),
                        atol=1e-5, rtol=1e-5), "multi-class mismatch"

    # 4) module-default feature dims (L=1024, D=256, C=1) at small N with the
    #    bf16 default path: exercises the unpadded-L / partial-block / bigger
    #    tile configuration end to end.
    N4, L4, D4 = 37, 1024, 256
    k2 = jax.random.split(jax.random.PRNGKey(1), 7)
    x4 = jax.random.normal(k2[0], (N4, L4), dtype=jnp.float32)
    wa4 = jax.random.normal(k2[1], (L4, D4), dtype=jnp.float32) * 0.1
    ba4 = jax.random.normal(k2[2], (D4,), dtype=jnp.float32) * 0.1
    wb4 = jax.random.normal(k2[3], (L4, D4), dtype=jnp.float32) * 0.1
    bb4 = jax.random.normal(k2[4], (D4,), dtype=jnp.float32) * 0.1
    wc4 = jax.random.normal(k2[5], (D4, 1), dtype=jnp.float32) * 0.1
    bc4 = jax.random.normal(k2[6], (1,), dtype=jnp.float32) * 0.1
    A4, _ = attn_net_gated_forward(x4, wa4, ba4, wb4, bb4, wc4, bc4)
    A4 = jax.block_until_ready(A4)
    A4_ref = _reference(x4, wa4, ba4, wb4, bb4, wc4, bc4)
    assert jnp.allclose(A4, A4_ref, atol=5e-2, rtol=5e-2), "default-dims mismatch"

    print("KERNEL_OK")
</pallas_src>

<mosaic_0001>
module attributes {stable_mosaic.version = 11 : i64} {
  func.func @_gated_attn_kernel(%arg0: i32, %arg1: memref<16x32xf32, #tpu.memory_space<vmem>>, %arg2: memref<32x256xf32, #tpu.memory_space<vmem>>, %arg3: memref<1x256xf32, #tpu.memory_space<vmem>>, %arg4: memref<1x128xf32, #tpu.memory_space<vmem>>, %arg5: memref<1x1xf32, #tpu.memory_space<vmem>>, %arg6: memref<16x1xf32, #tpu.memory_space<vmem>>) attributes {dimension_semantics = [#tpu.dimension_semantics<parallel>], iteration_bounds = array<i64: 2>, scalar_prefetch = 0 : i64, scratch_operands = 0 : i64, tpu.core_type = #tpu.core_type<tc>, window_params = [{transform_indices = @transform_0, window_bounds = array<i64: 16, 32>}, {pipeline_mode = #tpu.pipeline_mode<synchronous>, transform_indices = @transform_1, window_bounds = array<i64: 32, 256>}, {pipeline_mode = #tpu.pipeline_mode<synchronous>, transform_indices = @transform_2, window_bounds = array<i64: 1, 256>}, {pipeline_mode = #tpu.pipeline_mode<synchronous>, transform_indices = @transform_3, window_bounds = array<i64: 1, 128>}, {pipeline_mode = #tpu.pipeline_mode<synchronous>, transform_indices = @transform_4, window_bounds = array<i64: 1, 1>}, {transform_indices = @transform_5, window_bounds = array<i64: 16, 1>}]} {
    %c0 = arith.constant 0 : index
    %c0_0 = arith.constant 0 : index
    %0 = vector.load %arg1[%c0, %c0_0] : memref<16x32xf32, #tpu.memory_space<vmem>>, vector<16x32xf32>
    %c0_1 = arith.constant 0 : index
    %c0_2 = arith.constant 0 : index
    %1 = vector.load %arg2[%c0_1, %c0_2] : memref<32x256xf32, #tpu.memory_space<vmem>>, vector<32x256xf32>
    %cst = arith.constant dense<0.000000e+00> : vector<16x256xf32>
    %2 = tpu.matmul %0, %1, %cst {dimension_numbers = #tpu.dot_dimension_numbers<[1], [0], [0], [1], [0, 0, 1, 1], [], []>} : vector<16x32xf32>, vector<32x256xf32>, vector<16x256xf32> -> vector<16x256xf32>
    %c0_3 = arith.constant 0 : index
    %c0_4 = arith.constant 0 : index
    %3 = vector.load %arg3[%c0_3, %c0_4] : memref<1x256xf32, #tpu.memory_space<vmem>>, vector<1x256xf32>
    %4 = vector.broadcast %3 : vector<1x256xf32> to vector<16x256xf32>
    %5 = arith.addf %2, %4 : vector<16x256xf32>
    %6 = vector.extract_strided_slice %5 {offsets = [0, 0], sizes = [16, 128], strides = [1, 1]} : vector<16x256xf32> to vector<16x128xf32>
    %7 = math.tanh %6 : vector<16x128xf32>
    %8 = vector.extract_strided_slice %5 {offsets = [0, 128], sizes = [16, 128], strides = [1, 1]} : vector<16x256xf32> to vector<16x128xf32>
    %9 = arith.negf %8 : vector<16x128xf32>
    %10 = math.exp %9 : vector<16x128xf32>
    %cst_5 = arith.constant 1.000000e+00 : f32
    %11 = vector.broadcast %cst_5 : f32 to vector<16x128xf32>
    %12 = arith.addf %11, %10 : vector<16x128xf32>
    %13 = arith.divf %11, %12 : vector<16x128xf32>
    %14 = arith.mulf %7, %13 : vector<16x128xf32>
    %c0_6 = arith.constant 0 : index
    %c0_7 = arith.constant 0 : index
    %15 = vector.load %arg4[%c0_6, %c0_7] : memref<1x128xf32, #tpu.memory_space<vmem>>, vector<1x128xf32>
    %16 = vector.broadcast %15 : vector<1x128xf32> to vector<16x128xf32>
    %17 = arith.mulf %14, %16 : vector<16x128xf32>
    %cst_8 = arith.constant dense<0.000000e+00> : vector<16xf32>
    %18 = vector.multi_reduction <add>, %17, %cst_8 [1] : vector<16x128xf32> to vector<16xf32>
    %19 = vector.shape_cast %18 : vector<16xf32> to vector<16x1xf32>
    %c0_9 = arith.constant 0 : index
    %c0_10 = arith.constant 0 : index
    %20 = vector.load %arg5[%c0_9, %c0_10] : memref<1x1xf32, #tpu.memory_space<vmem>>, vector<1x1xf32>
    %21 = vector.broadcast %20 : vector<1x1xf32> to vector<16x1xf32>
    %22 = arith.addf %19, %21 : vector<16x1xf32>
    %c0_11 = arith.constant 0 : index
    %c0_12 = arith.constant 0 : index
    %23 = vector.load %arg6[%c0_11, %c0_12] : memref<16x1xf32, #tpu.memory_space<vmem>>, vector<16x1xf32>
    tpu.vector_store %arg6[%c0_11, %c0_12], %22 {strides = array<i32>} : memref<16x1xf32, #tpu.memory_space<vmem>>, vector<16x1xf32>,
    return
  }
  func.func @transform_0(%arg0: i32) -> (i32, i32) {
    %c0_i32 = arith.constant 0 : i32
    %c0_i32_0 = arith.constant 0 : i32
    return %arg0, %c0_i32 : i32, i32
  }
  func.func @transform_1(%arg0: i32) -> (i32, i32) {
    %c0_i32 = arith.constant 0 : i32
    %c0_i32_0 = arith.constant 0 : i32
    %c0_i32_1 = arith.constant 0 : i32
    return %c0_i32, %c0_i32_0 : i32, i32
  }
  func.func @transform_2(%arg0: i32) -> (i32, i32) {
    %c0_i32 = arith.constant 0 : i32
    %c0_i32_0 = arith.constant 0 : i32
    %c0_i32_1 = arith.constant 0 : i32
    return %c0_i32, %c0_i32_0 : i32, i32
  }
  func.func @transform_3(%arg0: i32) -> (i32, i32) {
    %c0_i32 = arith.constant 0 : i32
    %c0_i32_0 = arith.constant 0 : i32
    %c0_i32_1 = arith.constant 0 : i32
    return %c0_i32, %c0_i32_0 : i32, i32
  }
  func.func @transform_4(%arg0: i32) -> (i32, i32) {
    %c0_i32 = arith.constant 0 : i32
    %c0_i32_0 = arith.constant 0 : i32
    %c0_i32_1 = arith.constant 0 : i32
    return %c0_i32, %c0_i32_0 : i32, i32
  }
  func.func @transform_5(%arg0: i32) -> (i32, i32) {
    %c0_i32 = arith.constant 0 : i32
    %c0_i32_0 = arith.constant 0 : i32
    return %arg0, %c0_i32 : i32, i32
  }
}

</mosaic_0001>

<llo_original>
// kernel: tpu_custom_call.1
$region0: #{tpu_custom_call.1}
  #allocation0 [shape = 'u32[]', space=smem, size = 0x4, offset = 0x4, fixed_abs, tag = 'smem constant byte address 0x4 - core index']
  #allocation1 [shape = 'u32[144,128]{1,0:T(1,128)}', space=vmem, size = 0x12000, scoped, tag = 'internal scratch']
  #allocation2 [shape = 'f32[1,1]{1,0:T(1,128)S(1)}', space=vmem, size = 0x200, scoped, tag = 'scoped memory for tpu_custom_call.1']
  %s0 = inlined_call_operand.hbm [shape: f32[20,32], index: 0, kind: input, shape index: {}]
  %s1 = inlined_call_operand.hbm [shape: f32[32,256], index: 1, kind: input, shape index: {}]
  %s2 = inlined_call_operand.vmem [shape: f32[1,256], index: 2, kind: input, shape index: {}]
  %s3 = inlined_call_operand.vmem [shape: f32[1,128], index: 3, kind: input, shape index: {}]
  %s4 = inlined_call_operand.<no memory space> [shape: f32[1,1], index: 4, kind: input, shape index: {}]
  %s5 = inlined_call_operand.vmem [shape: f32[20,1], index: 5, kind: output, shape index: {}]
  %s6 = sld [smem:[#allocation0]]
  $region109: #{tpu_custom_call.1} parent=0
    _
  %s8 = ssub.s32 1, %s6
  %s9 = scalar_select 0, %s8, %s6
  %v10 = vstv %s4
  %11 = vst [vmem:[#allocation2] sm:$0x1] %v10
  $region1: #{tpu_custom_call.1} parent=0
    #allocation3 [shape = 'u8[16384]{0}', space=vmem, size = 0x4000, scoped, tag = 'input window, operand 0']
    #allocation4 [shape = 's32[2]{0}', space=sflag, size = 0x8, scoped, tag = 'scoped memory for tpu_custom_call.1']
    #allocation5 [shape = 'u8[32768]{0}', space=vmem, size = 0x8000, scoped, tag = 'input window, operand 1, single buffered']
    #allocation6 [shape = 's32[1]{0}', space=sflag, size = 0x4, scoped, tag = 'scoped memory for tpu_custom_call.1']
    #allocation7 [shape = 'u8[16384]{0}', space=vmem, size = 0x4000, scoped, tag = 'output window, operand 0']
    %12 = vsyncpa [#allocation4], 0
    %s13 = scalar_lea.sflag [#allocation4], 1
    %14 = vsyncpa %s13, 0
    %15 = vsyncpa [#allocation6], 0
    loop: start=0, step=1, limit=4
    $region2: #{tpu_custom_call.1} parent=1 // loop_pre_header
      _
    $region3: #{tpu_custom_call.1} parent=1 // loop_header
      %s17 = sphi 0, %s21
      %p18 = scmp.ge.s32.totalorder %s17, 4
      %s27 = sphi 0, %s29
      %s30 = sphi 0, %s27
      %s31 = sphi 0, %s30
      %s47 = sphi 0, %s31
      %s51 = sphi 0, %s51
      %s53 = sphi 0, %s51
      %s54 = sphi 0, %s53
      %s68 = sphi 0, %s54
      %s72 = sphi 0, %s72
      %s74 = sphi 0, %s72
      %s75 = sphi 0, %s74
      %s89 = sphi 0, %s75
      %s93 = sphi 0, %s93
      %s95 = sphi 0, %s93
      %s96 = sphi 0, %s95
      %s110 = sphi 0, %s96
      %s114 = sphi 0, %s114
      %s116 = sphi 0, %s114
      %s117 = sphi 0, %s116
      %s131 = sphi 0, %s117
      %s137 = sphi 0, %s139
      %s140 = sphi 0, %s137
      %s141 = sphi 0, %s140
      %s157 = sphi 0, %s141
    $region4: #{tpu_custom_call.1} parent=1 // loop_header_branch
      %20 = sbr.rel (%p18) target = $region8
    $region5: #{tpu_custom_call.1} parent=1 // loop_body
      %s22 = ssub.s32 %s17, 1
      %s23 = ssub.s32 %s17, 2
      %s24 = sadd.s32 %s17, 1
      %s25 = ssub.s32 %s17, %s24
      %p26 = scmp.eq.s32.totalorder %s25, 0
      %s28 = sadd.s32 %s27, 1
      %s29 = scalar_select %p26, %s27, %s28
      %p32 = pneg %p26
      %p33 = scmp.eq.s32.totalorder %s17, 1
      %p34 = por %p32, %p33
      %p35 = scmp.ne.s32.totalorder %s27, %s30
      %p36 = scmp.eq.s32.totalorder %s17, 0
      %p37 = por %p35, %p36
      %p38 = scmp.ne.s32.totalorder %s27, %s30
      %p39 = scmp.eq.s32.totalorder %s22, 1
      %p40 = por %p38, %p39
      %p41 = scmp.ne.s32.totalorder %s30, %s31
      %p42 = scmp.eq.s32.totalorder %s22, 0
      %p43 = por %p41, %p42
      %p44 = scmp.ne.s32.totalorder %s30, %s31
      %p45 = scmp.eq.s32.totalorder %s23, 1
      %p46 = por %p44, %p45
      %p48 = scmp.ne.s32.totalorder %s31, %s47
      %p49 = scmp.eq.s32.totalorder %s23, 0
      %p50 = por %p48, %p49
      %s52 = sadd.s32 %s51, 1
      %p55 = scmp.eq.s32.totalorder %s17, 1
      %p56 = scmp.ne.s32.totalorder %s51, %s53
      %p57 = scmp.eq.s32.totalorder %s17, 0
      %p58 = por %p56, %p57
      %p59 = scmp.ne.s32.totalorder %s51, %s53
      %p60 = scmp.eq.s32.totalorder %s22, 1
      %p61 = por %p59, %p60
      %p62 = scmp.ne.s32.totalorder %s53, %s54
      %p63 = scmp.eq.s32.totalorder %s22, 0
      %p64 = por %p62, %p63
      %p65 = scmp.ne.s32.totalorder %s53, %s54
      %p66 = scmp.eq.s32.totalorder %s23, 1
      %p67 = por %p65, %p66
      %p69 = scmp.ne.s32.totalorder %s54, %s68
      %p70 = scmp.eq.s32.totalorder %s23, 0
      %p71 = por %p69, %p70
      %s73 = sadd.s32 %s72, 1
      %p76 = scmp.eq.s32.totalorder %s17, 1
      %p77 = scmp.ne.s32.totalorder %s72, %s74
      %p78 = scmp.eq.s32.totalorder %s17, 0
      %p79 = por %p77, %p78
      %p80 = scmp.ne.s32.totalorder %s72, %s74
      %p81 = scmp.eq.s32.totalorder %s22, 1
      %p82 = por %p80, %p81
      %p83 = scmp.ne.s32.totalorder %s74, %s75
      %p84 = scmp.eq.s32.totalorder %s22, 0
      %p85 = por %p83, %p84
      %p86 = scmp.ne.s32.totalorder %s74, %s75
      %p87 = scmp.eq.s32.totalorder %s23, 1
      %p88 = por %p86, %p87
      %p90 = scmp.ne.s32.totalorder %s75, %s89
      %p91 = scmp.eq.s32.totalorder %s23, 0
      %p92 = por %p90, %p91
      %s94 = sadd.s32 %s93, 1
      %p97 = scmp.eq.s32.totalorder %s17, 1
      %p98 = scmp.ne.s32.totalorder %s93, %s95
      %p99 = scmp.eq.s32.totalorder %s17, 0
      %p100 = por %p98, %p99
      %p101 = scmp.ne.s32.totalorder %s93, %s95
      %p102 = scmp.eq.s32.totalorder %s22, 1
      %p103 = por %p101, %p102
      %p104 = scmp.ne.s32.totalorder %s95, %s96
      %p105 = scmp.eq.s32.totalorder %s22, 0
      %p106 = por %p104, %p105
      %p107 = scmp.ne.s32.totalorder %s95, %s96
      %p108 = scmp.eq.s32.totalorder %s23, 1
      %p109 = por %p107, %p108
      %p111 = scmp.ne.s32.totalorder %s96, %s110
      %p112 = scmp.eq.s32.totalorder %s23, 0
      %p113 = por %p111, %p112
      %s115 = sadd.s32 %s114, 1
      %p118 = scmp.eq.s32.totalorder %s17, 1
      %p119 = scmp.ne.s32.totalorder %s114, %s116
      %p120 = scmp.eq.s32.totalorder %s17, 0
      %p121 = por %p119, %p120
      %p122 = scmp.ne.s32.totalorder %s114, %s116
      %p123 = scmp.eq.s32.totalorder %s22, 1
      %p124 = por %p122, %p123
      %p125 = scmp.ne.s32.totalorder %s116, %s117
      %p126 = scmp.eq.s32.totalorder %s22, 0
      %p127 = por %p125, %p126
      %p128 = scmp.ne.s32.totalorder %s116, %s117
      %p129 = scmp.eq.s32.totalorder %s23, 1
      %p130 = por %p128, %p129
      %p132 = scmp.ne.s32.totalorder %s117, %s131
      %p133 = scmp.eq.s32.totalorder %s23, 0
      %p134 = por %p132, %p133
      %s135 = ssub.s32 %s17, %s24
      %p136 = scmp.eq.s32.totalorder %s135, 0
      %s138 = sadd.s32 %s137, 1
      %s139 = scalar_select %p136, %s137, %s138
      %p142 = pneg %p136
      %p143 = scmp.eq.s32.totalorder %s17, 1
      %p144 = por %p142, %p143
      %p145 = scmp.ne.s32.totalorder %s137, %s140
      %p146 = scmp.eq.s32.totalorder %s17, 0
      %p147 = por %p145, %p146
      %p148 = scmp.ne.s32.totalorder %s137, %s140
      %p149 = scmp.eq.s32.totalorder %s22, 1
      %p150 = por %p148, %p149
      %p151 = scmp.ne.s32.totalorder %s140, %s141
      %p152 = scmp.eq.s32.totalorder %s22, 0
      %p153 = por %p151, %p152
      %p154 = scmp.ne.s32.totalorder %s140, %s141
      %p155 = scmp.eq.s32.totalorder %s23, 1
      %p156 = por %p154, %p155
      %p158 = scmp.ne.s32.totalorder %s141, %s157
      %p159 = scmp.eq.s32.totalorder %s23, 0
      %p160 = por %p158, %p159
      %p161 = scmp.le.s32.totalorder 1, %s17
      %p162 = scmp.lt.s32.totalorder %s17, 3
      %p163 = pnand %p161, %p162
      %p164 = pneg %p163
      // Predicated region
      $region9: #{tpu_custom_call.1} parent=5 // pred_check
        _
      $region10: #{tpu_custom_call.1} parent=5 // pred_check_branch
        %166 = sbr.rel (%p163) target = $region12
      $region11: #{tpu_custom_call.1} parent=5 // pred_region
        %s167 = ssub.s32 %s17, 1
        // Predicated region
        $region13: #{tpu_custom_call.1} parent=11 // pred_check
          %p168 = pneg %p64
        $region14: #{tpu_custom_call.1} parent=11 // pred_check_branch
          %170 = sbr.rel (%p168) target = $region16
        $region15: #{tpu_custom_call.1} parent=11 // pred_region
          %s172 = ssub.s32 1024, 1024
          %173 = vsyncadd [#allocation6], %s172
          %s174 = sshll.u32 [#allocation5], 4
          %s175 = int_to_ptr.vmem [resolvable:$true] %s174
          %180 = dma.hbm_to_vmem [thread:$0]  %s1, 1024, %s175, [#allocation6], 256, 256, 16
        $region16: #{tpu_custom_call.1} parent=11 // pred_fallthru
          _
        // Predicated region
        $region17: #{tpu_custom_call.1} parent=11 // pred_check
          %p181 = pneg %p85
        $region18: #{tpu_custom_call.1} parent=11 // pred_check_branch
          %183 = sbr.rel (%p181) target = $region20
        $region19: #{tpu_custom_call.1} parent=11 // pred_region
          _
        $region20: #{tpu_custom_call.1} parent=11 // pred_fallthru
          _
        // Predicated region
        $region21: #{tpu_custom_call.1} parent=11 // pred_check
          %p184 = pneg %p106
        $region22: #{tpu_custom_call.1} parent=11 // pred_check_branch
          %186 = sbr.rel (%p184) target = $region24
        $region23: #{tpu_custom_call.1} parent=11 // pred_region
          _
        $region24: #{tpu_custom_call.1} parent=11 // pred_fallthru
          _
        // Predicated region
        $region25: #{tpu_custom_call.1} parent=11 // pred_check
          %p187 = pneg %p127
        $region26: #{tpu_custom_call.1} parent=11 // pred_check_branch
          %189 = sbr.rel (%p187) target = $region28
        $region27: #{tpu_custom_call.1} parent=11 // pred_region
          _
        $region28: #{tpu_custom_call.1} parent=11 // pred_fallthru
          _
      $region12: #{tpu_custom_call.1} parent=5 // pred_fallthru
        _
      %p190 = scmp.lt.s32.totalorder %s17, 2
      // Predicated region
      $region29: #{tpu_custom_call.1} parent=5 // pred_check
        %p191 = pneg %p190
      $region30: #{tpu_custom_call.1} parent=5 // pred_check_branch
        %193 = sbr.rel (%p191) target = $region32
      $region31: #{tpu_custom_call.1} parent=5 // pred_region
        // Predicated region
        $region33: #{tpu_custom_call.1} parent=31 // pred_check
          %p194 = pneg %p37
        $region34: #{tpu_custom_call.1} parent=31 // pred_check_branch
          %196 = sbr.rel (%p194) target = $region36
        $region35: #{tpu_custom_call.1} parent=31 // pred_region
          %s197 = sand.u32 %s27, 1
          %s198 = scalar_lea.sflag [#allocation4], %s197
          %s199 = sand.u32 %s27, 1
          %s200 = smul.addr %s199, 16
          %s201 = scalar_lea.vmem [#allocation3], %s200
          %s202 = smul.u32 2, %s17
          %s203 = ssub.s32 3, %s202
          %p204 = scmp.lt.s32.totalorder %s203, 2
          %s205 = scalar_select %p204, %s203, 2
          %s206 = smul.u32 128, %s205
          %s208 = ssub.s32 256, %s206
          %209 = vsyncadd %s198, %s208
          %p210 = scmp.ne.s32.totalorder 0, %s206
          %s211 = smul.addr %s202, 128
          %s212 = scalar_lea.hbm %s0, %s211
          %s213 = smul.u32 8, %s205
          %s214 = sshll.u32 %s201, 4
          %s215 = int_to_ptr.vmem [resolvable:$true] %s214
          %s216 = sshll.u32 %s213, 4
          %220 = dma.hbm_to_vmem [thread:$0]  (%p210), %s212, %s216, %s215, %s198, 128, 128, 8
        $region36: #{tpu_custom_call.1} parent=31 // pred_fallthru
          _
      $region32: #{tpu_custom_call.1} parent=5 // pred_fallthru
        _
      %p221 = scmp.le.s32.totalorder 1, %s17
      %p222 = scmp.lt.s32.totalorder %s17, 3
      %p223 = pnand %p221, %p222
      %p224 = pneg %p223
      // Predicated region
      $region37: #{tpu_custom_call.1} parent=5 // pred_check
        _
      $region38: #{tpu_custom_call.1} parent=5 // pred_check_branch
        %226 = sbr.rel (%p223) target = $region40
      $region39: #{tpu_custom_call.1} parent=5 // pred_region
        %s227 = ssub.s32 %s17, 1
        %s228 = sand.u32 %s30, 1
        %s229 = scalar_lea.sflag [#allocation4], %s228
        %s230 = sand.u32 %s30, 1
        %s231 = smul.addr %s230, 16
        %s232 = scalar_lea.vmem [#allocation3], %s231
        // Predicated region
        $region41: #{tpu_custom_call.1} parent=39 // pred_check
          %p233 = pneg %p43
        $region42: #{tpu_custom_call.1} parent=39 // pred_check_branch
          %235 = sbr.rel (%p233) target = $region44
        $region43: #{tpu_custom_call.1} parent=39 // pred_region
          %236 = dma.done %s229, 256
        $region44: #{tpu_custom_call.1} parent=39 // pred_fallthru
          _
        // Predicated region
        $region45: #{tpu_custom_call.1} parent=39 // pred_check
          %p237 = pneg %p64
        $region46: #{tpu_custom_call.1} parent=39 // pred_check_branch
          %239 = sbr.rel (%p237) target = $region48
        $region47: #{tpu_custom_call.1} parent=39 // pred_region
          %240 = dma.done [#allocation6], 1024
        $region48: #{tpu_custom_call.1} parent=39 // pred_fallthru
          _
        %s241 = sand.u32 %s30, 1
        %s242 = scalar_lea.sflag [#allocation4], %s241
        %s243 = sand.u32 %s30, 1
        %s244 = smul.addr %s243, 16
        %s245 = scalar_lea.vmem [#allocation3], %s244
        %p246 = pneg %p43
        %p247 = pneg %p40
        %p248 = pneg %p64
        %p249 = pneg %p61
        %p250 = pneg %p85
        %p251 = pneg %p82
        %p252 = pneg %p106
        %p253 = pneg %p103
        %p254 = pneg %p127
        %p255 = pneg %p124
        %p256 = pneg %p153
        %p257 = pneg %p150
        %s258 = sand.u32 %s140, 1
        %s259 = sand.u32 %s140, 1
        %s260 = smul.addr %s259, 16
        %s261 = scalar_lea.vmem [#allocation7], %s260
        %s262 = smul.u32 2, %s22
        %s263 = ssub.s32 3, %s262
        %p264 = scmp.lt.s32.totalorder %s263, 2
        %s265 = scalar_select %p264, %s263, 2
        %s266 = smul.u32 128, %s265
        %s267 = smul.u32 2, %s22
        %s268 = ssub.s32 3, %s267
        %p269 = scmp.lt.s32.totalorder %s268, 2
        %s270 = scalar_select %p269, %s268, 2
        %s271 = smul.u32 128, %s270
        %v272 = vld [vmem:[%s232] sm:$0xff]
        %v273 = vld [vmem:[%s232 + $0x8] sm:$0xff]
        %v274 = vld [vmem:[#allocation5] sm:$0xff]
        %v275 = vld [vmem:[#allocation5 + $0x8] sm:$0xff]
        %v276 = vld [vmem:[#allocation5 + $0x10] sm:$0xff]
        %v277 = vld [vmem:[#allocation5 + $0x18] sm:$0xff]
        %v278 = vld [vmem:[#allocation5 + $0x20] sm:$0xff]
        %v279 = vld [vmem:[#allocation5 + $0x28] sm:$0xff]
        %v280 = vld [vmem:[#allocation5 + $0x30] sm:$0xff]
        %v281 = vld [vmem:[#allocation5 + $0x38] sm:$0xff]
        %v282 = vld [vmem:[%s2] sm:$0x3]
        %v284 = vlaneseq
        %v285 = vshrl.u32 %v284, 7
        %v286 = vsub.s32 0, %v285
        %v287 = vrot.slane %v282, %v286
        %v288 = vlaneseq
        %v289 = vshrl.u32 %v288, 7
        %v290 = vsub.s32 1, %v289
        %v291 = vrot.slane %v282, %v290
        %vm294 = vcmask 261120
        %v296 = vsel %vm294, %v272, 0
        %v299 = vsel %vm294, %v273, 0
        %301 = vmatprep.subr.mxu0 %v275
        %302 = vmatpush1.msra.mxu0 %v274
        %303 = vmatprep.subr.mxu0 %v277
        %304 = vmatpush1.msra.mxu0 %v276
        %305 = vmatprep.subr.mxu0 %v279
        %306 = vmatpush1.msra.mxu0 %v278
        %307 = vmatprep.subr.mxu0 %v281
        %308 = vmatpush1.msra.mxu0 %v280
        %309 = vmatprep.subr.mxu0 0.0
        %310 = vmatpush1.msra.mxu0 0.0
        %311 = vmatprep.subr.mxu0 0.0
        %312 = vmatpush1.msra.mxu0 0.0
        %313 = vmatprep.subr.mxu0 0.0
        %314 = vmatpush1.msra.mxu0 0.0
        %315 = vmatprep.subr.mxu0 0.0
        %316 = vmatpush1.msra.mxu0 0.0
        %317 = vmatprep.subr.mxu0 0.0
        %318 = vmatpush1.msra.mxu0 0.0
        %319 = vmatprep.subr.mxu0 0.0
        %320 = vmatpush1.msra.mxu0 0.0
        %321 = vmatprep.subr.mxu0 0.0
        %322 = vmatpush1.msra.mxu0 0.0
        %323 = vmatprep.subr.mxu0 0.0
        %324 = vmatpush1.msra.mxu0 0.0
        %325 = vmatprep.subr.mxu0 0.0
        %326 = vmatpush1.msra.mxu0 0.0
        %327 = vmatprep.subr.mxu0 0.0
        %328 = vmatpush1.msra.mxu0 0.0
        %329 = vmatprep.subr.mxu0 0.0
        %330 = vmatpush1.msra.mxu0 0.0
        %331 = vmatprep.subr.mxu0 0.0
        %332 = vmatpush1.msra.mxu0 0.0
        %333 = vmatprep.subr.mxu0 0.0
        %334 = vmatpush1.msra.mxu0 0.0
        %335 = vmatprep.subr.mxu0 0.0
        %336 = vmatpush1.msra.mxu0 0.0
        %337 = vmatprep.subr.mxu0 0.0
        %338 = vmatpush1.msra.mxu0 0.0
        %339 = vmatprep.subr.mxu0 0.0
        %340 = vmatpush1.msra.mxu0 0.0
        %341 = vmatprep.subr.mxu0 0.0
        %342 = vmatpush1.msra.mxu0 0.0
        %343 = vmatprep.subr.mxu0 0.0
        %344 = vmatpush1.msra.mxu0 0.0
        %345 = vmatprep.subr.mxu0 0.0
        %346 = vmatpush1.msra.mxu0 0.0
        %347 = vmatprep.subr.mxu0 0.0
        %348 = vmatpush1.msra.mxu0 0.0
        %349 = vmatprep.subr.mxu0 0.0
        %350 = vmatpush1.msra.mxu0 0.0
        %351 = vmatprep.subr.mxu0 0.0
        %352 = vmatpush1.msra.mxu0 0.0
        %353 = vmatprep.subr.mxu0 0.0
        %354 = vmatpush1.msra.mxu0 0.0
        %355 = vmatprep.subr.mxu0 0.0
        %356 = vmatpush1.msra.mxu0 0.0
        %357 = vmatprep.subr.mxu0 0.0
        %358 = vmatpush1.msra.mxu0 0.0
        %359 = vmatprep.subr.mxu0 0.0
        %360 = vmatpush1.msra.mxu0 0.0
        %361 = vmatprep.subr.mxu0 0.0
        %362 = vmatpush1.msra.mxu0 0.0
        %363 = vmatprep.subr.mxu0 0.0
        %364 = vmatpush1.msra.mxu0 0.0
        %365 = vmatprep.mubr.f32.mxu0 0.0
        %366 = vmatmul.mubr.f32.gmra.mrb[0].mxu0 %v296
        %v367 = vpop.f32.mrb[0].mxu0
        %v368 = vadd.f32 %v287, %v367
        %v369 = vpop.f32.mrb[0].mxu0
        %v370 = vadd.f32 %v291, %v369
        %371 = vmatprep.mubr.f32.mxu0 0.0
        %372 = vmatmul.mubr.f32.gmra.mrb[0].mxu0 %v299
        %v373 = vpop.f32.mrb[0].mxu0
        %v374 = vadd.f32 %v287, %v373
        %v375 = vpop.f32.mrb[0].mxu0
        %v376 = vadd.f32 %v291, %v375
        %377 = vdwg.mxu0
        %v378 = vtanh.pop %v368
        %v379 = vtanh.pop %v374
        %v380 = vxor.u32 %v370, 2147483648
        %v381 = vxor.u32 %v376, 2147483648
        %v382 = vmul.f32 %v380, 1.442695
        %v383 = vpow.pop %v382
        %v384 = vmul.f32 %v381, 1.442695
        %v385 = vpow.pop %v384
        %v386 = vadd.f32 %v383, 1.0
        %v387 = vadd.f32 %v385, 1.0
        %v388 = vrcp.pop %v386
        %v389 = vmul.f32 1.0, %v388
        %v390 = vrcp.pop %v387
        %v391 = vmul.f32 1.0, %v390
        %v392 = vmul.f32 %v378, %v389
        %v393 = vmul.f32 %v379, %v391
        %v394 = vld [vmem:[%s3] sm:$0x1]
        %v396 = vlaneseq
        %v397 = vshrl.u32 %v396, 7
        %v398 = vsub.s32 0, %v397
        %v399 = vrot.slane %v394, %v398
        %v401 = vmul.f32 %v392, %v399
        %v402 = vmul.f32 %v393, %v399
        %403 = vadd.xlane.f32.xlu0 %v401
        %v404 = vpop.xlane.xlu0 %403
        %405 = vadd.xlane.f32.xlu0 %v402
        %v406 = vpop.xlane.xlu0 %405
        %v407 = vld [vmem:[#allocation2] sm:$0x1]
        %v409 = vlaneseq
        %v410 = vshrl.u32 %v409, 7
        %v411 = vsub.s32 0, %v410
        %v412 = vrot.slane %v407, %v411
        %v414 = vadd.f32 %v404, %v412
        %v415 = vadd.f32 %v406, %v412
        %vm416 = vcmask 7168
        %417 = vst.msk [vmem:[%s261] sm:$0xff] %vm416, %v414
        %418 = vst.msk [vmem:[%s261 + $0x8] sm:$0xff] %vm416, %v415
        %s419 = sand.u32 %s140, 1
        %s420 = sand.u32 %s140, 1
        %s421 = smul.addr %s420, 16
        %s422 = scalar_lea.vmem [#allocation7], %s421
        // Predicated region
        $region49: #{tpu_custom_call.1} parent=39 // pred_check
          %p423 = pneg %p150
        $region50: #{tpu_custom_call.1} parent=39 // pred_check_branch
          %425 = sbr.rel (%p423) target = $region52
        $region51: #{tpu_custom_call.1} parent=39 // pred_region
          %s426 = smul.u32 2, %s22
          %s427 = ssub.s32 3, %s426
          %p428 = scmp.lt.s32.totalorder %s427, 2
          %s429 = scalar_select %p428, %s427, 2
          %s430 = smul.u32 128, %s429
          %p431 = scmp.ne.s32.totalorder 0, %s430
          %s432 = smul.addr %s426, 8
          %s433 = scalar_lea.vmem %s5, %s432
          // Predicated region
          $region53: #{tpu_custom_call.1} parent=51 // pred_check
            %p434 = pneg %p431
          $region54: #{tpu_custom_call.1} parent=51 // pred_check_branch
            %436 = sbr.rel (%p434) target = $region56
          $region55: #{tpu_custom_call.1} parent=51 // pred_region
            // Predicated region
            $region57: #{tpu_custom_call.1} parent=55 // pred_check
              _
            $region58: #{tpu_custom_call.1} parent=55 // pred_check_branch
              %438 = sbr.rel (0) target = $region60
            $region59: #{tpu_custom_call.1} parent=55 // pred_region
              // Predicated region
              $region79: #{tpu_custom_call.1} parent=59 // pred_check
                _
              $region80: #{tpu_custom_call.1} parent=59 // pred_check_branch
                %489 = sbr.rel (0) target = $region82
              $region81: #{tpu_custom_call.1} parent=59 // pred_region
                %s490 = sshrl.u32 %s429, 1
                // While loop
                $region83: #{tpu_custom_call.1} parent=81 // loop_pre_header
                  _
                $region84: #{tpu_custom_call.1} parent=81 // loop_header
                  %s492 = sphi 0, %s494
                  %p493 = scmp.ge.s32.totalorder %s492, %s490
                  %s497 = sphi 0, %s506
                  %s498 = sphi %s422, %s509
                  %s499 = sphi %s433, %s510
                $region85: #{tpu_custom_call.1} parent=81 // loop_header_branch
                  %496 = sbr.rel (%p493) target = $region89
                $region86: #{tpu_custom_call.1} parent=81 // loop_body
                  %v500 = vld [vmem:[%s498] sm:$0xff]
                  %501 = vst [vmem:[%s499] sm:$0xff] %v500
                  %v502 = vld [vmem:[%s498 + $0x8] sm:$0xff]
                  %503 = vst [vmem:[%s499 + $0x8] sm:$0xff] %v502
                  %s504 = sadd.s32 1, %s497
                  %p505 = scmp.ge.s32.totalorder %s504, %s490
                  %s506 = scalar_select %p505, 0, %s504
                  %s507 = smul.u32 %s506, 16
                  %s508 = smul.u32 %s506, 16
                  %s509 = scalar_lea.vmem %s422, %s507 [#allocation7]
                  %s510 = scalar_lea.vmem %s433, %s508
                $region87: #{tpu_custom_call.1} parent=81 // loop_footer
                  %s494 = sadd.s32 %s492, 1
                $region88: #{tpu_custom_call.1} parent=81 // loop_footer_branch
                  %491 = sbr.rel target = $region84
                $region89: #{tpu_custom_call.1} parent=81 // loop_exit
                  _
                %s511 = sshrl.u32 %s429, 1
                %s512 = sand.u32 %s429, 1
                %s513 = smul.u32 %s511, 2
                %s514 = smul.u32 8, %s513
                %s515 = scalar_lea.vmem %s422, %s514 [#allocation7]
                %s516 = smul.u32 8, %s513
                %s517 = scalar_lea.vmem %s433, %s516
                // While loop
                $region90: #{tpu_custom_call.1} parent=81 // loop_pre_header
                  _
                $region91: #{tpu_custom_call.1} parent=81 // loop_header
                  %s519 = sphi 0, %s521
                  %p520 = scmp.ge.s32.totalorder %s519, %s512
                  %s524 = sphi 0, %s531
                  %s525 = sphi %s515, %s534
                  %s526 = sphi %s517, %s535
                $region92: #{tpu_custom_call.1} parent=81 // loop_header_branch
                  %523 = sbr.rel (%p520) target = $region96
                $region93: #{tpu_custom_call.1} parent=81 // loop_body
                  %v527 = vld [vmem:[%s525] sm:$0xff]
                  %528 = vst [vmem:[%s526] sm:$0xff] %v527
                  %s529 = sadd.s32 1, %s524
                  %p530 = scmp.ge.s32.totalorder %s529, %s512
                  %s531 = scalar_select %p530, 0, %s529
                  %s532 = smul.u32 %s531, 8
                  %s533 = smul.u32 %s531, 8
                  %s534 = scalar_lea.vmem %s515, %s532 [#allocation7]
                  %s535 = scalar_lea.vmem %s517, %s533
                $region94: #{tpu_custom_call.1} parent=81 // loop_footer
                  %s521 = sadd.s32 %s519, 1
                $region95: #{tpu_custom_call.1} parent=81 // loop_footer_branch
                  %518 = sbr.rel target = $region91
                $region96: #{tpu_custom_call.1} parent=81 // loop_exit
                  _
              $region82: #{tpu_custom_call.1} parent=59 // pred_fallthru
                _
              // Predicated region
              $region97: #{tpu_custom_call.1} parent=59 // pred_check
                _
              $region98: #{tpu_custom_call.1} parent=59 // pred_check_branch
                %537 = sbr.rel target = $region100
              $region99: #{tpu_custom_call.1} parent=59 // pred_region
                _
              $region100: #{tpu_custom_call.1} parent=59 // pred_fallthru
                _
            $region60: #{tpu_custom_call.1} parent=55 // pred_fallthru
              _
            // Predicated region
            $region61: #{tpu_custom_call.1} parent=55 // pred_check
              _
            $region62: #{tpu_custom_call.1} parent=55 // pred_check_branch
              %440 = sbr.rel target = $region64
            $region63: #{tpu_custom_call.1} parent=55 // pred_region
              %s442 = sshrl.u32 %s429, 1
              // While loop
              $region65: #{tpu_custom_call.1} parent=63 // loop_pre_header
                _
              $region66: #{tpu_custom_call.1} parent=63 // loop_header
                %s444 = sphi 0, %s446
                %p445 = scmp.ge.s32.totalorder %s444, %s442
                %s449 = sphi 0, %s458
                %s450 = sphi %s422, %s461
                %s451 = sphi %s433, %s462
              $region67: #{tpu_custom_call.1} parent=63 // loop_header_branch
                %448 = sbr.rel (%p445) target = $region71
              $region68: #{tpu_custom_call.1} parent=63 // loop_body
                %v452 = vld [vmem:[%s450] sm:$0xff]
                %453 = vst [vmem:[%s451] sm:$0xff] %v452
                %v454 = vld [vmem:[%s450 + $0x8] sm:$0xff]
                %455 = vst [vmem:[%s451 + $0x8] sm:$0xff] %v454
                %s456 = sadd.s32 1, %s449
                %p457 = scmp.ge.s32.totalorder %s456, %s442
                %s458 = scalar_select %p457, 0, %s456
                %s459 = smul.u32 %s458, 16
                %s460 = smul.u32 %s458, 16
                %s461 = scalar_lea.vmem %s422, %s459 [#allocation7]
                %s462 = scalar_lea.vmem %s433, %s460
              $region69: #{tpu_custom_call.1} parent=63 // loop_footer
                %s446 = sadd.s32 %s444, 1
              $region70: #{tpu_custom_call.1} parent=63 // loop_footer_branch
                %443 = sbr.rel target = $region66
              $region71: #{tpu_custom_call.1} parent=63 // loop_exit
                _
              %s463 = sshrl.u32 %s429, 1
              %s464 = sand.u32 %s429, 1
              %s465 = smul.u32 %s463, 2
              %s466 = smul.u32 8, %s465
              %s467 = scalar_lea.vmem %s422, %s466 [#allocation7]
              %s468 = smul.u32 8, %s465
              %s469 = scalar_lea.vmem %s433, %s468
              // While loop
              $region72: #{tpu_custom_call.1} parent=63 // loop_pre_header
                _
              $region73: #{tpu_custom_call.1} parent=63 // loop_header
                %s471 = sphi 0, %s473
                %p472 = scmp.ge.s32.totalorder %s471, %s464
                %s476 = sphi 0, %s483
                %s477 = sphi %s467, %s486
                %s478 = sphi %s469, %s487
              $region74: #{tpu_custom_call.1} parent=63 // loop_header_branch
                %475 = sbr.rel (%p472) target = $region78
              $region75: #{tpu_custom_call.1} parent=63 // loop_body
                %v479 = vld [vmem:[%s477] sm:$0xff]
                %480 = vst [vmem:[%s478] sm:$0xff] %v479
                %s481 = sadd.s32 1, %s476
                %p482 = scmp.ge.s32.totalorder %s481, %s464
                %s483 = scalar_select %p482, 0, %s481
                %s484 = smul.u32 %s483, 8
                %s485 = smul.u32 %s483, 8
                %s486 = scalar_lea.vmem %s467, %s484 [#allocation7]
                %s487 = scalar_lea.vmem %s469, %s485
              $region76: #{tpu_custom_call.1} parent=63 // loop_footer
                %s473 = sadd.s32 %s471, 1
              $region77: #{tpu_custom_call.1} parent=63 // loop_footer_branch
                %470 = sbr.rel target = $region73
              $region78: #{tpu_custom_call.1} parent=63 // loop_exit
                _
            $region64: #{tpu_custom_call.1} parent=55 // pred_fallthru
              _
          $region56: #{tpu_custom_call.1} parent=51 // pred_fallthru
            _
          %538 = vnop
        $region52: #{tpu_custom_call.1} parent=39 // pred_fallthru
          _
      $region40: #{tpu_custom_call.1} parent=5 // pred_fallthru
        _
      %p539 = scmp.le.s32.totalorder 2, %s17
      // Predicated region
      $region101: #{tpu_custom_call.1} parent=5 // pred_check
        %p540 = pneg %p539
      $region102: #{tpu_custom_call.1} parent=5 // pred_check_branch
        %542 = sbr.rel (%p540) target = $region104
      $region103: #{tpu_custom_call.1} parent=5 // pred_region
        %s543 = ssub.s32 %s17, 2
        // Predicated region
        $region105: #{tpu_custom_call.1} parent=103 // pred_check
          %p544 = pneg %p156
        $region106: #{tpu_custom_call.1} parent=103 // pred_check_branch
          %546 = sbr.rel (%p544) target = $region108
        $region107: #{tpu_custom_call.1} parent=103 // pred_region
          %s547 = sand.u32 %s141, 1
          %s548 = sand.u32 %s141, 1
          %s549 = smul.addr %s548, 16
          %s550 = scalar_lea.vmem [#allocation7], %s549
        $region108: #{tpu_custom_call.1} parent=103 // pred_fallthru
          _
      $region104: #{tpu_custom_call.1} parent=5 // pred_fallthru
        _
    $region6: #{tpu_custom_call.1} parent=1 // loop_footer
      %s21 = sadd.s32 1, %s17
    $region7: #{tpu_custom_call.1} parent=1 // loop_footer_branch
      %16 = sbr.rel target = $region3
    $region8: #{tpu_custom_call.1} parent=1 // loop_exit
      _
    %551 = vsyncpa [#allocation4], 1
    %s552 = scalar_lea.sflag [#allocation4], 1
    %553 = vsyncpa %s552, 1
    %554 = vsyncpa [#allocation6], 1

</llo_original>
